<compile_context>
chip_gen: v5e
topology: v5e:2x2
jax: 0.10.0
libtpu: 0.0.40
codegen_flags: <defaults>
</compile_context>

<pallas_src>
import functools

import jax
import jax.numpy as jnp
import numpy as np
from jax.experimental import pallas as pl
from jax.experimental.pallas import tpu as pltpu


def _round_up(a, m):
    return ((a + m - 1) // m) * m


def _cparams():
    # vmem_limit_bytes: v5e's scoped default is only 16 MiB; 48 MiB allows
    # tile_t ~ 1024 at realistic (F=128, H=512) sizes while staying under
    # v7x's 64 MiB physical VMEM.
    return pltpu.CompilerParams(
        dimension_semantics=("parallel", "parallel"),
        vmem_limit_bytes=48 * 1024 * 1024,
    )


@functools.lru_cache(maxsize=None)
def _roll_tap_mode():
    """How to realize shifted depthwise taps.

    Returns "jnp" if pltpu.roll matches jnp.roll (positive shift moves data
    toward higher indices), "rev" if it is the opposite convention, and
    "slice" if roll is unusable (fall back to sublane-misaligned slices,
    which are correct but force VMEM retile copies).
    """
    try:
        rows = 24
        x_np = np.arange(rows * 128, dtype=np.float32).reshape(rows, 128)

        def probe(x_ref, o_ref):
            o_ref[...] = pltpu.roll(x_ref[...], 8, axis=0)

        out = pl.pallas_call(
            probe, out_shape=jax.ShapeDtypeStruct((rows, 128), jnp.float32)
        )(jnp.asarray(x_np))
        out = np.asarray(jax.block_until_ready(out))
        if np.array_equal(out, np.roll(x_np, 8, axis=0)):
            return "jnp"
        if np.array_equal(out, np.roll(x_np, -8, axis=0)):
            return "rev"
        return "slice"
    except Exception:
        return "slice"


# ---------------------------------------------------------------------------
# Fused ConvBlock kernel (optionally with input 1x1 prologue / output epilogue)
# ---------------------------------------------------------------------------
def _make_block_kernel(*, tile_t, K, dilation, halo8, T_true, F, a1, a2,
                       no_res, fuse_in, fuse_out, out_alpha, mxu_dtype,
                       roll_mode):
    L = tile_t + 2 * halo8

    def shifted_tap(f, off):
        # tap[i, :] == f[i + off, :] for i in [0, tile_t); 0 <= off <= 2*halo8
        # so there is never any wrap-around.
        if off % 8 == 0:
            return f[off:off + tile_t, :]               # sublane-aligned slice
        if roll_mode == "jnp":
            return pltpu.roll(f, L - off, axis=0)[:tile_t, :]
        if roll_mode == "rev":
            return pltpu.roll(f, off, axis=0)[:tile_t, :]
        return f[off:off + tile_t, :]                   # misaligned fallback

    def kernel(*refs):
        it = iter(refs)
        prev_ref = next(it)
        cur_ref = next(it)
        nxt_ref = next(it)
        if fuse_in:
            inw_ref = next(it)
            inb_ref = next(it)
        w1_ref = next(it)
        b1_ref = next(it)
        wd_ref = next(it)
        bd_ref = next(it)
        wrs_ref = next(it)
        brs_ref = next(it)
        if fuse_out:
            ow_ref = next(it)
            ob_ref = next(it)
        o_ref = next(it)

        j = pl.program_id(1)

        # Halo'd window of the residual stream (raw input for the first
        # block): (tile_t + 2*halo8, Cin), assembled from 8-aligned strips.
        x_halo = jnp.concatenate([prev_ref[0], cur_ref[0], nxt_ref[0]], axis=0)

        if fuse_in:
            # input_conv 1x1: raw input -> residual stream, computed on the
            # halo'd window (a few extra matmul rows, no extra HBM pass).
            r_halo = (jnp.dot(x_halo.astype(mxu_dtype), inw_ref[...],
                              preferred_element_type=jnp.float32)
                      + inb_ref[...])
            cur = r_halo[halo8:halo8 + tile_t, :]
        else:
            r_halo = x_halo
            cur = cur_ref[0]

        # 1x1 conv F -> H + PReLU (hidden feature stays in VMEM only).
        f = (jnp.dot(r_halo.astype(mxu_dtype), w1_ref[...],
                     preferred_element_type=jnp.float32) + b1_ref[...])
        f = jnp.where(f > 0, f, a1 * f)

        # Zero frames outside [0, T_true): reproduces PyTorch's zero padding
        # of the depthwise input and kills clamped-halo garbage at the edges.
        t0 = j * tile_t - halo8
        gt = t0 + jax.lax.broadcasted_iota(jnp.int32, (L, 1), 0)
        f = jnp.where((gt >= 0) & (gt < T_true), f, 0.0)

        # Depthwise dilated conv (groups == channels) + PReLU.
        acc = jnp.zeros((tile_t, f.shape[1]), jnp.float32) + bd_ref[...]
        for k in range(K):
            off = halo8 + (k - 1) * dilation
            acc = acc + shifted_tap(f, off) * wd_ref[k, :]
        g = jnp.where(acc > 0, acc, a2 * acc)

        # Fused res/skip 1x1 projection (single MXU matmul) + residual adds.
        y = (jnp.dot(g.astype(mxu_dtype), wrs_ref[...],
                     preferred_element_type=jnp.float32) + brs_ref[...])
        if no_res:
            out = cur + y
        else:
            out = cur + y[:, :F] + y[:, F:]

        if fuse_out:
            # output_prelu -> output_conv (1x1) -> sigmoid, fused epilogue.
            out = jnp.where(out > 0, out, out_alpha * out)
            m = (jnp.dot(out.astype(mxu_dtype), ow_ref[...],
                         preferred_element_type=jnp.float32) + ob_ref[...])
            out = jax.nn.sigmoid(m)

        o_ref[0] = out.astype(o_ref.dtype)

    return kernel


def _fused_conv_block(x, blk, *, tile_t, T_true, mxu_dtype, roll_mode,
                      in_wb=None, out_wb_alpha=None):
    """One ConvBlock as a single pallas_call.

    x: (B, Tp, Cin); Cin == input_dim when in_wb is given (first block, input
    1x1 fused in front), else num_feats.  Returns (B, Tp, Cout) where
    Cout == 2*input_dim when out_wb_alpha is given (last block, output
    PReLU + 1x1 + sigmoid fused behind), else num_feats.
    """
    B, Tp, Cin = x.shape
    NT = Tp // tile_t
    F, H = blk["w1"].shape
    K = blk["wd"].shape[0]
    d = int(blk["dilation"])
    pad = d                                    # module passes padding=dilation
    # residual add requires a length-preserving depthwise conv (K == 3 here)
    assert (K - 1) * d == 2 * pad, "ConvBlock requires kernel_size == 3 with padding=dilation"
    halo8 = _round_up(d, 8)                    # 8-sublane-aligned halo strip
    assert tile_t % halo8 == 0 and tile_t >= halo8

    no_res = blk["no_res"]
    if no_res:
        wrs, brs = blk["ws"], blk["bs"]
    else:
        wrs = jnp.concatenate([blk["wr"], blk["ws"]], axis=1)     # (H, 2F)
        brs = jnp.concatenate([blk["br"], blk["bs"]], axis=1)     # (1, 2F)
    C_rs = wrs.shape[1]

    ratio = tile_t // halo8                    # halo8 divides tile_t (both pow2-aligned)
    nbh = Tp // halo8
    cur_map = lambda b, j: (b, j, 0)
    prev_map = lambda b, j: (b, jnp.maximum(j * ratio - 1, 0), 0)
    next_map = lambda b, j: (b, jnp.minimum((j + 1) * ratio, nbh - 1), 0)
    full = lambda b, j: (0, 0)

    def w(a):                                  # MXU operands, possibly bf16
        return a.astype(mxu_dtype)

    operands = [x, x, x]
    in_specs = [
        pl.BlockSpec((1, halo8, Cin), prev_map),     # prev halo strip
        pl.BlockSpec((1, tile_t, Cin), cur_map),     # current tile
        pl.BlockSpec((1, halo8, Cin), next_map),     # next halo strip
    ]
    if in_wb is not None:
        in_w, in_b = in_wb
        operands += [w(in_w), in_b]
        in_specs += [pl.BlockSpec(in_w.shape, full), pl.BlockSpec(in_b.shape, full)]
    operands += [w(blk["w1"]), blk["b1"], blk["wd"], blk["bd"], w(wrs), brs]
    in_specs += [
        pl.BlockSpec((F, H), full), pl.BlockSpec((1, H), full),
        pl.BlockSpec((K, H), full), pl.BlockSpec((1, H), full),
        pl.BlockSpec((H, C_rs), full), pl.BlockSpec((1, C_rs), full),
    ]
    out_alpha = None
    if out_wb_alpha is not None:
        out_w, out_b, out_alpha = out_wb_alpha
        out_alpha = float(out_alpha)
        operands += [w(out_w), out_b]
        in_specs += [pl.BlockSpec(out_w.shape, full), pl.BlockSpec(out_b.shape, full)]
        C_out = out_w.shape[1]
    else:
        C_out = F

    kernel = _make_block_kernel(
        tile_t=tile_t, K=K, dilation=d, halo8=halo8, T_true=T_true, F=F,
        a1=float(blk["a1"]), a2=float(blk["a2"]), no_res=no_res,
        fuse_in=in_wb is not None, fuse_out=out_wb_alpha is not None,
        out_alpha=out_alpha, mxu_dtype=mxu_dtype, roll_mode=roll_mode)

    # NOTE: weight/bias specs could use pipeline_mode=pl.Buffered(1) to skip
    # double-buffering; left at the default for portability across jax builds.
    return pl.pallas_call(
        kernel,
        out_shape=jax.ShapeDtypeStruct((B, Tp, C_out), jnp.float32),
        grid=(B, NT),
        in_specs=in_specs,
        out_specs=pl.BlockSpec((1, tile_t, C_out), cur_map),
        compiler_params=_cparams(),
    )(*operands)


# ---------------------------------------------------------------------------
# Forward pass
# ---------------------------------------------------------------------------
def _choose_tile_t(T, B, max_halo8, tile_t):
    if tile_t is None:
        tile_t = 1024               # big tiles amortize per-grid-step overhead
    tile_t = _round_up(max(int(tile_t), max_halo8), max_halo8)
    tile_t = min(tile_t, _round_up(T, max_halo8))
    # v7x: with B == 1, make sure there are >= 2 time tiles so both
    # TensorCores get work from the ("parallel", "parallel") grid.
    if B == 1:
        while tile_t > max_halo8 and _round_up(T, tile_t) // tile_t < 2:
            smaller = _round_up(tile_t // 2, max_halo8)
            if smaller >= tile_t:
                break
            tile_t = smaller
    return tile_t


def mask_generator_forward(params, x_nct, *, tile_t=None,
                           mxu_dtype=jnp.float32):
    """x_nct: (B, input_dim, T) -> (B, 2, input_dim, T), matching PyTorch."""
    B, D, T = x_nct.shape
    blocks = params["blocks"]
    n = len(blocks)
    max_halo8 = max(_round_up(int(b["dilation"]), 8) for b in blocks)
    tile_t = _choose_tile_t(T, B, max_halo8, tile_t)
    Tp = _round_up(T, tile_t)
    roll_mode = _roll_tap_mode()

    # TODO(synk): the (B,D,T)<->(B,T,D) transposes are left to XLA; they could
    # be folded into the first/last fused block (low priority per review).
    x = jnp.transpose(x_nct, (0, 2, 1)).astype(jnp.float32)      # (B, T, D)
    if Tp != T:
        x = jnp.pad(x, ((0, 0), (0, Tp - T), (0, 0)))            # masked in-kernel

    out = x
    for i, blk in enumerate(blocks):
        out = _fused_conv_block(
            out, blk, tile_t=tile_t, T_true=T, mxu_dtype=mxu_dtype,
            roll_mode=roll_mode,
            in_wb=(params["in_w"], params["in_b"]) if i == 0 else None,
            out_wb_alpha=((params["out_w"], params["out_b"],
                           params["out_alpha"]) if i == n - 1 else None))

    out = out[:, :T, :]                                          # drop time pad
    out = jnp.transpose(out, (0, 2, 1))                          # (B, 2D, T)
    return out.reshape(B, 2, D, T)


# ---------------------------------------------------------------------------
# Parameter init (deterministic, synthetic) and pure-JAX reference
# ---------------------------------------------------------------------------
def init_params(key, input_dim, kernel_size, num_feats, num_hidden,
                num_layers, num_stacks):
    n_blocks = num_layers * num_stacks
    keys = iter(jax.random.split(key, 4 + 10 * n_blocks))

    def mat(shape):
        return jax.random.normal(next(keys), shape, jnp.float32) * 0.1

    params = {
        "in_w": mat((input_dim, num_feats)),        # Conv1d(input_dim, F, 1)
        "in_b": mat((1, num_feats)),
        "blocks": [],
        "out_alpha": 0.25,                          # output_prelu default init
        "out_w": mat((num_feats, 2 * input_dim)),   # Conv1d(F, 2*input_dim, 1)
        "out_b": mat((1, 2 * input_dim)),
    }
    for s in range(num_stacks):
        for l in range(num_layers):
            no_res = (l == num_layers - 1) and (s == num_stacks - 1)
            blk = {
                "w1": mat((num_feats, num_hidden)),     # Conv1d(F, H, 1)
                "b1": mat((1, num_hidden)),
                "a1": 0.25,                             # PReLU
                "wd": mat((kernel_size, num_hidden)),   # depthwise Conv1d(H,H,k,groups=H)
                "bd": mat((1, num_hidden)),
                "a2": 0.25,                             # PReLU
                "ws": mat((num_hidden, num_feats)),     # skip_out Conv1d(H, F, 1)
                "bs": mat((1, num_feats)),
                "dilation": 2 ** l,
                "no_res": no_res,
            }
            if not no_res:
                blk["wr"] = mat((num_hidden, num_feats))  # res_out Conv1d(H, F, 1)
                blk["br"] = mat((1, num_feats))
            params["blocks"].append(blk)
    return params


def reference_forward(params, x_nct):
    """Pure-JAX reference with the same math as the PyTorch module."""
    B, D, T = x_nct.shape
    x = jnp.transpose(x_nct, (0, 2, 1))

    def pw(x, w, b):
        return jnp.einsum("btc,co->bto", x, w) + b

    def prelu(x, a):
        return jnp.where(x > 0, x, a * x)

    out = pw(x, params["in_w"], params["in_b"])
    for blk in params["blocks"]:
        f = prelu(pw(out, blk["w1"], blk["b1"]), blk["a1"])
        d = blk["dilation"]
        fp = jnp.pad(f, ((0, 0), (d, d), (0, 0)))
        acc = jnp.zeros_like(f) + blk["bd"]
        for k in range(blk["wd"].shape[0]):
            acc = acc + fp[:, k * d: k * d + T, :] * blk["wd"][k]
        f = prelu(acc, blk["a2"])
        if not blk["no_res"]:
            out = out + pw(f, blk["wr"], blk["br"])
        out = out + pw(f, blk["ws"], blk["bs"])
    out = prelu(out, params["out_alpha"])
    out = jax.nn.sigmoid(pw(out, params["out_w"], params["out_b"]))
    out = jnp.transpose(out, (0, 2, 1))
    return out.reshape(B, 2, D, T)


if __name__ == "__main__":
    key = jax.random.PRNGKey(0)
    # Small shapes consistent with the module; dilations 1,2,4,8 exercise both
    # the XLU-roll tap path (d < 8) and the aligned-slice tap path (d == 8).
    B, D, T = 2, 8, 16                        # batch, input_dim, time frames
    kernel_size, num_feats, num_hidden = 3, 16, 32
    num_layers, num_stacks = 4, 2

    pkey, xkey, xkey2 = jax.random.split(key, 3)
    params = init_params(pkey, D, kernel_size, num_feats, num_hidden,
                         num_layers, num_stacks)

    # Case 1: single time tile per batch element, f32 MXU path.
    x = jax.random.normal(xkey, (B, D, T), jnp.float32)       # PyTorch NCL layout
    out = jax.block_until_ready(mask_generator_forward(params, x))
    assert out.shape == (B, 2, D, T)
    ref = reference_forward(params, x)
    np.testing.assert_allclose(np.asarray(out), np.asarray(ref),
                               rtol=1e-5, atol=1e-5)

    # Case 2: tiled time axis (3 tiles, halo strips across tile boundaries,
    # T not a multiple of the tile).
    B2, T2 = 1, 40
    x2 = jax.random.normal(xkey2, (B2, D, T2), jnp.float32)
    out2 = jax.block_until_ready(mask_generator_forward(params, x2, tile_t=16))
    assert out2.shape == (B2, 2, D, T2)
    ref2 = reference_forward(params, x2)
    np.testing.assert_allclose(np.asarray(out2), np.asarray(ref2),
                               rtol=1e-5, atol=1e-5)

    # Case 3: bf16 MXU operands (v5e/v6e/v7x fast path), f32 accumulation.
    out3 = jax.block_until_ready(
        mask_generator_forward(params, x, mxu_dtype=jnp.bfloat16))
    assert out3.shape == (B, 2, D, T)
    np.testing.assert_allclose(np.asarray(out3), np.asarray(ref),
                               rtol=0, atol=5e-2)

    print("KERNEL_OK")
</pallas_src>

<mosaic_0001>
module attributes {stable_mosaic.version = 11 : i64} {
  func.func @probe(%arg0: memref<24x128xf32, #tpu.memory_space<vmem>>, %arg1: memref<24x128xf32, #tpu.memory_space<vmem>>) attributes {dimension_semantics = [], scalar_prefetch = 0 : i64, scratch_operands = 0 : i64, tpu.core_type = #tpu.core_type<tc>} {
    %c0 = arith.constant 0 : index
    %c0_0 = arith.constant 0 : index
    %0 = vector.load %arg0[%c0, %c0_0] : memref<24x128xf32, #tpu.memory_space<vmem>>, vector<24x128xf32>
    %c8_i32 = arith.constant 8 : i32
    %1 = tpu.dynamic_rotate %0 by %c8_i32 dim 0 : vector<24x128xf32>, i32 -> vector<24x128xf32>
    %c0_1 = arith.constant 0 : index
    %c0_2 = arith.constant 0 : index
    %2 = vector.load %arg1[%c0_1, %c0_2] : memref<24x128xf32, #tpu.memory_space<vmem>>, vector<24x128xf32>
    tpu.vector_store %arg1[%c0_1, %c0_2], %1 {strides = array<i32>} : memref<24x128xf32, #tpu.memory_space<vmem>>, vector<24x128xf32>,
    return
  }
}

module attributes {stable_mosaic.version = 11 : i64} {
  func.func @kernel(%arg0: i32, %arg1: i32, %arg2: memref<1x8x8xf32, #tpu.memory_space<vmem>>, %arg3: memref<1x16x8xf32, #tpu.memory_space<vmem>>, %arg4: memref<1x8x8xf32, #tpu.memory_space<vmem>>, %arg5: memref<8x16xf32, #tpu.memory_space<vmem>>, %arg6: memref<1x16xf32, #tpu.memory_space<vmem>>, %arg7: memref<16x32xf32, #tpu.memory_space<vmem>>, %arg8: memref<1x32xf32, #tpu.memory_space<vmem>>, %arg9: memref<3x32xf32, #tpu.memory_space<vmem>>, %arg10: memref<1x32xf32, #tpu.memory_space<vmem>>, %arg11: memref<32x32xf32, #tpu.memory_space<vmem>>, %arg12: memref<1x32xf32, #tpu.memory_space<vmem>>, %arg13: memref<1x16x16xf32, #tpu.memory_space<vmem>>) attributes {dimension_semantics = [#tpu.dimension_semantics<parallel>, #tpu.dimension_semantics<parallel>], iteration_bounds = array<i64: 2, 1>, scalar_prefetch = 0 : i64, scratch_operands = 0 : i64, tpu.core_type = #tpu.core_type<tc>, window_params = [{transform_indices = @transform_0, window_bounds = array<i64: 1, 8, 8>}, {transform_indices = @transform_1, window_bounds = array<i64: 1, 16, 8>}, {transform_indices = @transform_2, window_bounds = array<i64: 1, 8, 8>}, {pipeline_mode = #tpu.pipeline_mode<synchronous>, transform_indices = @transform_3, window_bounds = array<i64: 8, 16>}, {pipeline_mode = #tpu.pipeline_mode<synchronous>, transform_indices = @transform_4, window_bounds = array<i64: 1, 16>}, {pipeline_mode = #tpu.pipeline_mode<synchronous>, transform_indices = @transform_5, window_bounds = array<i64: 16, 32>}, {pipeline_mode = #tpu.pipeline_mode<synchronous>, transform_indices = @transform_6, window_bounds = array<i64: 1, 32>}, {pipeline_mode = #tpu.pipeline_mode<synchronous>, transform_indices = @transform_7, window_bounds = array<i64: 3, 32>}, {pipeline_mode = #tpu.pipeline_mode<synchronous>, transform_indices = @transform_8, window_bounds = array<i64: 1, 32>}, {pipeline_mode = #tpu.pipeline_mode<synchronous>, transform_indices = @transform_9, window_bounds = array<i64: 32, 32>}, {pipeline_mode = #tpu.pipeline_mode<synchronous>, transform_indices = @transform_10, window_bounds = array<i64: 1, 32>}, {transform_indices = @transform_11, window_bounds = array<i64: 1, 16, 16>}]} {
    %c0 = arith.constant 0 : index
    %c0_0 = arith.constant 0 : index
    %c0_1 = arith.constant 0 : index
    %0 = vector.load %arg2[%c0, %c0_0, %c0_1] : memref<1x8x8xf32, #tpu.memory_space<vmem>>, vector<1x8x8xf32>
    %1 = vector.shape_cast %0 : vector<1x8x8xf32> to vector<8x8xf32>
    %c0_2 = arith.constant 0 : index
    %c0_3 = arith.constant 0 : index
    %c0_4 = arith.constant 0 : index
    %2 = vector.load %arg3[%c0_2, %c0_3, %c0_4] : memref<1x16x8xf32, #tpu.memory_space<vmem>>, vector<1x16x8xf32>
    %3 = vector.shape_cast %2 : vector<1x16x8xf32> to vector<16x8xf32>
    %c0_5 = arith.constant 0 : index
    %c0_6 = arith.constant 0 : index
    %c0_7 = arith.constant 0 : index
    %4 = vector.load %arg4[%c0_5, %c0_6, %c0_7] : memref<1x8x8xf32, #tpu.memory_space<vmem>>, vector<1x8x8xf32>
    %5 = vector.shape_cast %4 : vector<1x8x8xf32> to vector<8x8xf32>
    %6 = tpu.concatenate %1, %3, %5 in 0 : vector<8x8xf32>, vector<16x8xf32>, vector<8x8xf32> -> vector<32x8xf32>
    %c0_8 = arith.constant 0 : index
    %c0_9 = arith.constant 0 : index
    %7 = vector.load %arg5[%c0_8, %c0_9] : memref<8x16xf32, #tpu.memory_space<vmem>>, vector<8x16xf32>
    %cst = arith.constant dense<0.000000e+00> : vector<32x16xf32>
    %8 = tpu.matmul %6, %7, %cst {dimension_numbers = #tpu.dot_dimension_numbers<[1], [0], [0], [1], [0, 0, 1, 1], [], []>} : vector<32x8xf32>, vector<8x16xf32>, vector<32x16xf32> -> vector<32x16xf32>
    %c0_10 = arith.constant 0 : index
    %c0_11 = arith.constant 0 : index
    %9 = vector.load %arg6[%c0_10, %c0_11] : memref<1x16xf32, #tpu.memory_space<vmem>>, vector<1x16xf32>
    %10 = vector.broadcast %9 : vector<1x16xf32> to vector<32x16xf32>
    %11 = arith.addf %8, %10 : vector<32x16xf32>
    %12 = vector.extract_strided_slice %11 {offsets = [8, 0], sizes = [16, 16], strides = [1, 1]} : vector<32x16xf32> to vector<16x16xf32>
    %c0_12 = arith.constant 0 : index
    %c0_13 = arith.constant 0 : index
    %13 = vector.load %arg7[%c0_12, %c0_13] : memref<16x32xf32, #tpu.memory_space<vmem>>, vector<16x32xf32>
    %cst_14 = arith.constant dense<0.000000e+00> : vector<32x32xf32>
    %14 = tpu.matmul %11, %13, %cst_14 {dimension_numbers = #tpu.dot_dimension_numbers<[1], [0], [0], [1], [0, 0, 1, 1], [], []>} : vector<32x16xf32>, vector<16x32xf32>, vector<32x32xf32> -> vector<32x32xf32>
    %c0_15 = arith.constant 0 : index
    %c0_16 = arith.constant 0 : index
    %15 = vector.load %arg8[%c0_15, %c0_16] : memref<1x32xf32, #tpu.memory_space<vmem>>, vector<1x32xf32>
    %16 = vector.broadcast %15 : vector<1x32xf32> to vector<32x32xf32>
    %17 = arith.addf %14, %16 : vector<32x32xf32>
    %cst_17 = arith.constant 0.000000e+00 : f32
    %18 = vector.broadcast %cst_17 : f32 to vector<32x32xf32>
    %19 = arith.cmpf ogt, %17, %18 : vector<32x32xf32>
    %cst_18 = arith.constant 2.500000e-01 : f32
    %20 = vector.broadcast %cst_18 : f32 to vector<32x32xf32>
    %21 = arith.mulf %20, %17 : vector<32x32xf32>
    %22 = arith.select %19, %17, %21 : vector<32x32xi1>, vector<32x32xf32>
    %c16_i32 = arith.constant 16 : i32
    %23 = arith.muli %arg1, %c16_i32 : i32
    %c8_i32 = arith.constant 8 : i32
    %24 = arith.subi %23, %c8_i32 : i32
    %25 = tpu.iota {dimensions = array<i32: 0>} : vector<32x1xi32>
    %26 = vector.broadcast %24 : i32 to vector<32x1xi32>
    %27 = arith.addi %26, %25 : vector<32x1xi32>
    %c0_i32 = arith.constant 0 : i32
    %28 = vector.broadcast %c0_i32 : i32 to vector<32x1xi32>
    %29 = arith.cmpi sge, %27, %28 : vector<32x1xi32>
    %c16_i32_19 = arith.constant 16 : i32
    %30 = vector.broadcast %c16_i32_19 : i32 to vector<32x1xi32>
    %31 = arith.cmpi slt, %27, %30 : vector<32x1xi32>
    %32 = arith.andi %29, %31 : vector<32x1xi1>
    %cst_20 = arith.constant 0.000000e+00 : f32
    %33 = vector.shape_cast %32 : vector<32x1xi1> to vector<32x1xi1>
    %34 = vector.broadcast %33 : vector<32x1xi1> to vector<32x32xi1>
    %35 = vector.broadcast %cst_20 : f32 to vector<32x32xf32>
    %36 = arith.select %34, %22, %35 : vector<32x32xi1>, vector<32x32xf32>
    %cst_21 = arith.constant 0.000000e+00 : f32
    %37 = vector.broadcast %cst_21 : f32 to vector<16x32xf32>
    %c0_22 = arith.constant 0 : index
    %c0_23 = arith.constant 0 : index
    %38 = vector.load %arg10[%c0_22, %c0_23] : memref<1x32xf32, #tpu.memory_space<vmem>>, vector<1x32xf32>
    %39 = vector.broadcast %38 : vector<1x32xf32> to vector<16x32xf32>
    %40 = arith.addf %37, %39 : vector<16x32xf32>
    %41 = vector.extract_strided_slice %36 {offsets = [7, 0], sizes = [16, 32], strides = [1, 1]} : vector<32x32xf32> to vector<16x32xf32>
    %c0_24 = arith.constant 0 : index
    %c0_25 = arith.constant 0 : index
    %42 = vector.load %arg9[%c0_24, %c0_25] : memref<3x32xf32, #tpu.memory_space<vmem>>, vector<1x32xf32>
    %43 = vector.shape_cast %42 : vector<1x32xf32> to vector<32xf32>
    %44 = vector.shape_cast %43 : vector<32xf32> to vector<1x32xf32>
    %45 = vector.broadcast %44 : vector<1x32xf32> to vector<16x32xf32>
    %46 = arith.mulf %41, %45 : vector<16x32xf32>
    %47 = arith.addf %40, %46 : vector<16x32xf32>
    %48 = vector.extract_strided_slice %36 {offsets = [8, 0], sizes = [16, 32], strides = [1, 1]} : vector<32x32xf32> to vector<16x32xf32>
    %c1 = arith.constant 1 : index
    %c0_26 = arith.constant 0 : index
    %49 = vector.load %arg9[%c1, %c0_26] : memref<3x32xf32, #tpu.memory_space<vmem>>, vector<1x32xf32>
    %50 = vector.shape_cast %49 : vector<1x32xf32> to vector<32xf32>
    %51 = vector.shape_cast %50 : vector<32xf32> to vector<1x32xf32>
    %52 = vector.broadcast %51 : vector<1x32xf32> to vector<16x32xf32>
    %53 = arith.mulf %48, %52 : vector<16x32xf32>
    %54 = arith.addf %47, %53 : vector<16x32xf32>
    %55 = vector.extract_strided_slice %36 {offsets = [9, 0], sizes = [16, 32], strides = [1, 1]} : vector<32x32xf32> to vector<16x32xf32>
    %c2 = arith.constant 2 : index
    %c0_27 = arith.constant 0 : index
    %56 = vector.load %arg9[%c2, %c0_27] : memref<3x32xf32, #tpu.memory_space<vmem>>, vector<1x32xf32>
    %57 = vector.shape_cast %56 : vector<1x32xf32> to vector<32xf32>
    %58 = vector.shape_cast %57 : vector<32xf32> to vector<1x32xf32>
    %59 = vector.broadcast %58 : vector<1x32xf32> to vector<16x32xf32>
    %60 = arith.mulf %55, %59 : vector<16x32xf32>
    %61 = arith.addf %54, %60 : vector<16x32xf32>
    %cst_28 = arith.constant 0.000000e+00 : f32
    %62 = vector.broadcast %cst_28 : f32 to vector<16x32xf32>
    %63 = arith.cmpf ogt, %61, %62 : vector<16x32xf32>
    %cst_29 = arith.constant 2.500000e-01 : f32
    %64 = vector.broadcast %cst_29 : f32 to vector<16x32xf32>
    %65 = arith.mulf %64, %61 : vector<16x32xf32>
    %66 = arith.select %63, %61, %65 : vector<16x32xi1>, vector<16x32xf32>
    %c0_30 = arith.constant 0 : index
    %c0_31 = arith.constant 0 : index
    %67 = vector.load %arg11[%c0_30, %c0_31] : memref<32x32xf32, #tpu.memory_space<vmem>>, vector<32x32xf32>
    %cst_32 = arith.constant dense<0.000000e+00> : vector<16x32xf32>
    %68 = tpu.matmul %66, %67, %cst_32 {dimension_numbers = #tpu.dot_dimension_numbers<[1], [0], [0], [1], [0, 0, 1, 1], [], []>} : vector<16x32xf32>, vector<32x32xf32>, vector<16x32xf32> -> vector<16x32xf32>
    %c0_33 = arith.constant 0 : index
    %c0_34 = arith.constant 0 : index
    %69 = vector.load %arg12[%c0_33, %c0_34] : memref<1x32xf32, #tpu.memory_space<vmem>>, vector<1x32xf32>
    %70 = vector.broadcast %69 : vector<1x32xf32> to vector<16x32xf32>
    %71 = arith.addf %68, %70 : vector<16x32xf32>
    %72 = vector.extract_strided_slice %71 {offsets = [0, 0], sizes = [16, 16], strides = [1, 1]} : vector<16x32xf32> to vector<16x16xf32>
    %73 = arith.addf %12, %72 : vector<16x16xf32>
    %74 = vector.extract_strided_slice %71 {offsets = [0, 16], sizes = [16, 16], strides = [1, 1]} : vector<16x32xf32> to vector<16x16xf32>
    %75 = arith.addf %73, %74 : vector<16x16xf32>
    %c0_35 = arith.constant 0 : index
    %c0_36 = arith.constant 0 : index
    %c0_37 = arith.constant 0 : index
    %76 = vector.load %arg13[%c0_35, %c0_36, %c0_37] : memref<1x16x16xf32, #tpu.memory_space<vmem>>, vector<1x16x16xf32>
    %77 = vector.shape_cast %76 : vector<1x16x16xf32> to vector<16x16xf32>
    %78 = vector.shape_cast %75 : vector<16x16xf32> to vector<1x16x16xf32>
    tpu.vector_store %arg13[%c0_35, %c0_36, %c0_37], %78 {strides = array<i32>} : memref<1x16x16xf32, #tpu.memory_space<vmem>>, vector<1x16x16xf32>,
    return
  }
  func.func @transform_0(%arg0: i32, %arg1: i32) -> (i32, i32, i32) {
    %c2_i32 = arith.constant 2 : i32
    %0 = arith.muli %arg1, %c2_i32 : i32
    %c1_i32 = arith.constant 1 : i32
    %1 = arith.subi %0, %c1_i32 : i32
    %c0_i32 = arith.constant 0 : i32
    %2 = arith.maxsi %1, %c0_i32 : i32
    %c0_i32_0 = arith.constant 0 : i32
    %c0_i32_1 = arith.constant 0 : i32
    return %arg0, %2, %c0_i32_0 : i32, i32, i32
  }
  func.func @transform_1(%arg0: i32, %arg1: i32) -> (i32, i32, i32) {
    %c0_i32 = arith.constant 0 : i32
    %c0_i32_0 = arith.constant 0 : i32
    return %arg0, %arg1, %c0_i32 : i32, i32, i32
  }
  func.func @transform_2(%arg0: i32, %arg1: i32) -> (i32, i32, i32) {
    %c1_i32 = arith.constant 1 : i32
    %0 = arith.addi %arg1, %c1_i32 : i32
    %c2_i32 = arith.constant 2 : i32
    %1 = arith.muli %0, %c2_i32 : i32
    %c1_i32_0 = arith.constant 1 : i32
    %2 = arith.minsi %1, %c1_i32_0 : i32
    %c0_i32 = arith.constant 0 : i32
    %c0_i32_1 = arith.constant 0 : i32
    return %arg0, %2, %c0_i32 : i32, i32, i32
  }
  func.func @transform_3(%arg0: i32, %arg1: i32) -> (i32, i32) {
    %c0_i32 = arith.constant 0 : i32
    %c0_i32_0 = arith.constant 0 : i32
    %c0_i32_1 = arith.constant 0 : i32
    return %c0_i32, %c0_i32_0 : i32, i32
  }
  func.func @transform_4(%arg0: i32, %arg1: i32) -> (i32, i32) {
    %c0_i32 = arith.constant 0 : i32
    %c0_i32_0 = arith.constant 0 : i32
    %c0_i32_1 = arith.constant 0 : i32
    return %c0_i32, %c0_i32_0 : i32, i32
  }
  func.func @transform_5(%arg0: i32, %arg1: i32) -> (i32, i32) {
    %c0_i32 = arith.constant 0 : i32
    %c0_i32_0 = arith.constant 0 : i32
    %c0_i32_1 = arith.constant 0 : i32
    return %c0_i32, %c0_i32_0 : i32, i32
  }
  func.func @transform_6(%arg0: i32, %arg1: i32) -> (i32, i32) {
    %c0_i32 = arith.constant 0 : i32
    %c0_i32_0 = arith.constant 0 : i32
    %c0_i32_1 = arith.constant 0 : i32
    return %c0_i32, %c0_i32_0 : i32, i32
  }
  func.func @transform_7(%arg0: i32, %arg1: i32) -> (i32, i32) {
    %c0_i32 = arith.constant 0 : i32
    %c0_i32_0 = arith.constant 0 : i32
    %c0_i32_1 = arith.constant 0 : i32
    return %c0_i32, %c0_i32_0 : i32, i32
  }
  func.func @transform_8(%arg0: i32, %arg1: i32) -> (i32, i32) {
    %c0_i32 = arith.constant 0 : i32
    %c0_i32_0 = arith.constant 0 : i32
    %c0_i32_1 = arith.constant 0 : i32
    return %c0_i32, %c0_i32_0 : i32, i32
  }
  func.func @transform_9(%arg0: i32, %arg1: i32) -> (i32, i32) {
    %c0_i32 = arith.constant 0 : i32
    %c0_i32_0 = arith.constant 0 : i32
    %c0_i32_1 = arith.constant 0 : i32
    return %c0_i32, %c0_i32_0 : i32, i32
  }
  func.func @transform_10(%arg0: i32, %arg1: i32) -> (i32, i32) {
    %c0_i32 = arith.constant 0 : i32
    %c0_i32_0 = arith.constant 0 : i32
    %c0_i32_1 = arith.constant 0 : i32
    return %c0_i32, %c0_i32_0 : i32, i32
  }
  func.func @transform_11(%arg0: i32, %arg1: i32) -> (i32, i32, i32) {
    %c0_i32 = arith.constant 0 : i32
    %c0_i32_0 = arith.constant 0 : i32
    return %arg0, %arg1, %c0_i32 : i32, i32, i32
  }
}

</mosaic_0001>

<llo_original>
// kernel: tpu_custom_call.1
$region0: #{tpu_custom_call.1}
  #allocation0 [shape = 'u32[]', space=smem, size = 0x4, offset = 0x4, fixed_abs, tag = 'smem constant byte address 0x4 - core index']
  #allocation1 [shape = 'u32[72,128]{1,0:T(1,128)}', space=vmem, size = 0x9000, scoped, tag = 'internal scratch']
  %s0 = inlined_call_operand.hbm [shape: f32[24,128], index: 0, kind: input, shape index: {}]
  %s1 = inlined_call_operand.hbm [shape: f32[24,128], index: 1, kind: output, shape index: {}]
  %s2 = sld [smem:[#allocation0]]
  $region18: #{tpu_custom_call.1} parent=0
    _
  %s4 = ssub.s32 1, %s2
  %s5 = scalar_select 0, %s4, %s2
  $region1: #{tpu_custom_call.1} parent=0
    #allocation2 [shape = 'u8[12288]{0}', space=vmem, size = 0x3000, scoped, tag = 'input window, operand 0, single buffered']
    #allocation3 [shape = 's32[1]{0}', space=sflag, size = 0x4, scoped, tag = 'scoped memory for tpu_custom_call.1']
    #allocation4 [shape = 's32[1]{0}', space=sflag, size = 0x4, scoped, tag = 'scoped memory for tpu_custom_call.1']
    #allocation5 [shape = 'u8[12288]{0}', space=vmem, size = 0x3000, scoped, tag = 'output window, operand 0, single buffered']
    %6 = vsyncpa [#allocation3], 0
    %7 = vsyncpa [#allocation4], 0
    // Predicated region
    $region2: #{tpu_custom_call.1} parent=1 // pred_check
      _
    $region3: #{tpu_custom_call.1} parent=1 // pred_check_branch
      %9 = sbr.rel (0) target = $region5
    $region4: #{tpu_custom_call.1} parent=1 // pred_region
      %11 = vsyncadd [#allocation3], 0
      %s12 = sshll.u32 %s0, 4
      %s13 = int_to_ptr.hbm [resolvable:$true] %s12
      %s14 = sshll.u32 [#allocation2], 4
      %s15 = int_to_ptr.vmem [resolvable:$true] %s14
      %20 = dma.hbm_to_vmem [thread:$0]  %s13, 384, %s15, [#allocation3], 128, 128, 8
    $region5: #{tpu_custom_call.1} parent=1 // pred_fallthru
      _
    // Predicated region
    $region6: #{tpu_custom_call.1} parent=1 // pred_check
      _
    $region7: #{tpu_custom_call.1} parent=1 // pred_check_branch
      %22 = sbr.rel (0) target = $region9
    $region8: #{tpu_custom_call.1} parent=1 // pred_region
      %24 = dma.done [#allocation3], 384
    $region9: #{tpu_custom_call.1} parent=1 // pred_fallthru
      _
    %v25 = vld [vmem:[#allocation2] sm:$0xff]
    %v26 = vld [vmem:[#allocation2 + $0x8] sm:$0xff]
    %v27 = vld [vmem:[#allocation2 + $0x10] sm:$0xff]
    %28 = vst [vmem:[#allocation5] sm:$0xff] %v27
    %29 = vst [vmem:[#allocation5 + $0x8] sm:$0xff] %v25
    %30 = vst [vmem:[#allocation5 + $0x10] sm:$0xff] %v26
    // Predicated region
    $region10: #{tpu_custom_call.1} parent=1 // pred_check
      _
    $region11: #{tpu_custom_call.1} parent=1 // pred_check_branch
      %32 = sbr.rel (0) target = $region13
    $region12: #{tpu_custom_call.1} parent=1 // pred_region
      %34 = vsyncadd [#allocation4], 0
      %s35 = sshll.u32 [#allocation5], 4
      %s36 = int_to_ptr.vmem [resolvable:$true] %s35
      %s37 = sshll.u32 %s1, 4
      %s38 = int_to_ptr.hbm [resolvable:$true] %s37
      %43 = dma.vmem_to_hbm [thread:$0]  %s36, 384, %s38, [#allocation4], 128, 128, 8
    $region13: #{tpu_custom_call.1} parent=1 // pred_fallthru
      _
    // Predicated region
    $region14: #{tpu_custom_call.1} parent=1 // pred_check
      _
    $region15: #{tpu_custom_call.1} parent=1 // pred_check_branch
      %45 = sbr.rel (0) target = $region17
    $region16: #{tpu_custom_call.1} parent=1 // pred_region
      %47 = dma.done [#allocation4], 384
    $region17: #{tpu_custom_call.1} parent=1 // pred_fallthru
      _
    %48 = vsyncpa [#allocation3], 1
    %49 = vsyncpa [#allocation4], 1

// kernel: tpu_custom_call.1
$region0: #{tpu_custom_call.1}
  #allocation0 [shape = 'u32[]', space=smem, size = 0x4, offset = 0x4, fixed_abs, tag = 'smem constant byte address 0x4 - core index']
  #allocation1 [shape = 'u32[72,128]{1,0:T(1,128)}', space=vmem, size = 0x9000, scoped, tag = 'internal scratch']
  %s0 = inlined_call_operand.vmem [shape: f32[2,16,8], index: 0, kind: input, shape index: {}]
  %s1 = inlined_call_operand.vmem [shape: f32[2,16,8], index: 1, kind: input, shape index: {}]
  %s2 = inlined_call_operand.vmem [shape: f32[2,16,8], index: 2, kind: input, shape index: {}]
  %s3 = inlined_call_operand.vmem [shape: f32[8,16], index: 3, kind: input, shape index: {}]
  %s4 = inlined_call_operand.vmem [shape: f32[1,16], index: 4, kind: input, shape index: {}]
  %s5 = inlined_call_operand.vmem [shape: f32[16,32], index: 5, kind: input, shape index: {}]
  %s6 = inlined_call_operand.vmem [shape: f32[1,32], index: 6, kind: input, shape index: {}]
  %s7 = inlined_call_operand.vmem [shape: f32[3,32], index: 7, kind: input, shape index: {}]
  %s8 = inlined_call_operand.vmem [shape: f32[1,32], index: 8, kind: input, shape index: {}]
  %s9 = inlined_call_operand.vmem [shape: f32[32,32], index: 9, kind: input, shape index: {}]
  %s10 = inlined_call_operand.vmem [shape: f32[1,32], index: 10, kind: input, shape index: {}]
  %s11 = inlined_call_operand.hbm [shape: f32[2,16,16], index: 11, kind: output, shape index: {}]
  %s12 = sld [smem:[#allocation0]]
  $region77: #{tpu_custom_call.1} parent=0
    _
  %s14 = ssub.s32 1, %s12
  %s15 = scalar_select 0, %s14, %s12
  $region1: #{tpu_custom_call.1} parent=0
    #allocation2 [shape = 'u8[16384]{0}', space=vmem, size = 0x4000, scoped, tag = 'output window, operand 0']
    #allocation3 [shape = 's32[2]{0}', space=sflag, size = 0x8, scoped, tag = 'scoped memory for tpu_custom_call.1']
    %16 = vsyncpa [#allocation3], 0
    %s17 = scalar_lea.sflag [#allocation3], 1
    %18 = vsyncpa %s17, 0
    loop: start=0, step=1, limit=4
    $region2: #{tpu_custom_call.1} parent=1 // loop_pre_header
      _
    $region3: #{tpu_custom_call.1} parent=1 // loop_header
      %s20 = sphi 0, %s24
      %p21 = scmp.ge.s32.totalorder %s20, 4
      %s27 = sphi 0, %s39
      %s28 = sphi 0, %s35
      %s29 = sphi 0, %s27
      %s30 = sphi 0, %s28
      %s31 = sphi 0, %s29
      %s32 = sphi 0, %s30
      %s52 = sphi 0, %s54
      %s55 = sphi 0, %s52
      %s56 = sphi 0, %s55
      %s72 = sphi 0, %s56
      %s80 = sphi 0, %s82
      %s83 = sphi 0, %s80
      %s84 = sphi 0, %s83
      %s100 = sphi 0, %s84
      %s116 = sphi 0, %s118
      %s119 = sphi 0, %s116
      %s120 = sphi 0, %s119
      %s136 = sphi 0, %s120
      %s140 = sphi 0, %s140
      %s142 = sphi 0, %s140
      %s143 = sphi 0, %s142
      %s157 = sphi 0, %s143
      %s161 = sphi 0, %s161
      %s163 = sphi 0, %s161
      %s164 = sphi 0, %s163
      %s178 = sphi 0, %s164
      %s182 = sphi 0, %s182
      %s184 = sphi 0, %s182
      %s185 = sphi 0, %s184
      %s199 = sphi 0, %s185
      %s203 = sphi 0, %s203
      %s205 = sphi 0, %s203
      %s206 = sphi 0, %s205
      %s220 = sphi 0, %s206
      %s224 = sphi 0, %s224
      %s226 = sphi 0, %s224
      %s227 = sphi 0, %s226
      %s241 = sphi 0, %s227
      %s245 = sphi 0, %s245
      %s247 = sphi 0, %s245
      %s248 = sphi 0, %s247
      %s262 = sphi 0, %s248
      %s266 = sphi 0, %s266
      %s268 = sphi 0, %s266
      %s269 = sphi 0, %s268
      %s283 = sphi 0, %s269
      %s287 = sphi 0, %s287
      %s289 = sphi 0, %s287
      %s290 = sphi 0, %s289
      %s304 = sphi 0, %s290
      %s312 = sphi 0, %s314
      %s315 = sphi 0, %s312
      %s316 = sphi 0, %s315
      %s332 = sphi 0, %s316
    $region4: #{tpu_custom_call.1} parent=1 // loop_header_branch
      %23 = sbr.rel (%p21) target = $region8
    $region5: #{tpu_custom_call.1} parent=1 // loop_body
      %s25 = ssub.s32 %s20, 1
      %s26 = ssub.s32 %s20, 2
      %s33 = sadd.s32 1, %s28
      %p34 = scmp.ge.s32.totalorder %s33, 1
      %s35 = scalar_select %p34, 0, %s33
      %s36 = sadd.s32 1, %s27
      %s37 = scalar_select %p34, %s36, %s27
      %p38 = scmp.ge.s32.totalorder %s37, 2
      %s39 = scalar_select %p38, 0, %s37
      %s40 = smul.u32 %s28, 2
      %s41 = ssub.s32 %s40, 1
      %p42 = scmp.gt.s32.totalorder %s41, 0
      %s43 = scalar_select %p42, %s41, 0
      %s44 = smul.u32 %s35, 2
      %s45 = ssub.s32 %s44, 1
      %p46 = scmp.gt.s32.totalorder %s45, 0
      %s47 = scalar_select %p46, %s45, 0
      %s48 = ssub.s32 %s27, %s39
      %s49 = ssub.s32 %s43, %s47
      %s50 = sor.u32 %s48, %s49
      %p51 = scmp.eq.s32.totalorder %s50, 0
      %s53 = sadd.s32 %s52, 1
      %s54 = scalar_select %p51, %s52, %s53
      %p57 = pneg %p51
      %p58 = scmp.eq.s32.totalorder %s20, 1
      %p59 = por %p57, %p58
      %p60 = scmp.ne.s32.totalorder %s52, %s55
      %p61 = scmp.eq.s32.totalorder %s20, 0
      %p62 = por %p60, %p61
      %p63 = scmp.ne.s32.totalorder %s52, %s55
      %p64 = scmp.eq.s32.totalorder %s25, 1
      %p65 = por %p63, %p64
      %p66 = scmp.ne.s32.totalorder %s55, %s56
      %p67 = scmp.eq.s32.totalorder %s25, 0
      %p68 = por %p66, %p67
      %p69 = scmp.ne.s32.totalorder %s55, %s56
      %p70 = scmp.eq.s32.totalorder %s26, 1
      %p71 = por %p69, %p70
      %p73 = scmp.ne.s32.totalorder %s56, %s72
      %p74 = scmp.eq.s32.totalorder %s26, 0
      %p75 = por %p73, %p74
      %s76 = ssub.s32 %s27, %s39
      %s77 = ssub.s32 %s28, %s35
      %s78 = sor.u32 %s76, %s77
      %p79 = scmp.eq.s32.totalorder %s78, 0
      %s81 = sadd.s32 %s80, 1
      %s82 = scalar_select %p79, %s80, %s81
      %p85 = pneg %p79
      %p86 = scmp.eq.s32.totalorder %s20, 1
      %p87 = por %p85, %p86
      %p88 = scmp.ne.s32.totalorder %s80, %s83
      %p89 = scmp.eq.s32.totalorder %s20, 0
      %p90 = por %p88, %p89
      %p91 = scmp.ne.s32.totalorder %s80, %s83
      %p92 = scmp.eq.s32.totalorder %s25, 1
      %p93 = por %p91, %p92
      %p94 = scmp.ne.s32.totalorder %s83, %s84
      %p95 = scmp.eq.s32.totalorder %s25, 0
      %p96 = por %p94, %p95
      %p97 = scmp.ne.s32.totalorder %s83, %s84
      %p98 = scmp.eq.s32.totalorder %s26, 1
      %p99 = por %p97, %p98
      %p101 = scmp.ne.s32.totalorder %s84, %s100
      %p102 = scmp.eq.s32.totalorder %s26, 0
      %p103 = por %p101, %p102
      %s104 = sadd.s32 %s28, 1
      %s105 = smul.u32 %s104, 2
      %p106 = scmp.lt.s32.totalorder %s105, 1
      %s107 = scalar_select %p106, %s105, 1
      %s108 = sadd.s32 %s35, 1
      %s109 = smul.u32 %s108, 2
      %p110 = scmp.lt.s32.totalorder %s109, 1
      %s111 = scalar_select %p110, %s109, 1
      %s112 = ssub.s32 %s27, %s39
      %s113 = ssub.s32 %s107, %s111
      %s114 = sor.u32 %s112, %s113
      %p115 = scmp.eq.s32.totalorder %s114, 0
      %s117 = sadd.s32 %s116, 1
      %s118 = scalar_select %p115, %s116, %s117
      %p121 = pneg %p115
      %p122 = scmp.eq.s32.totalorder %s20, 1
      %p123 = por %p121, %p122
      %p124 = scmp.ne.s32.totalorder %s116, %s119
      %p125 = scmp.eq.s32.totalorder %s20, 0
      %p126 = por %p124, %p125
      %p127 = scmp.ne.s32.totalorder %s116, %s119
      %p128 = scmp.eq.s32.totalorder %s25, 1
      %p129 = por %p127, %p128
      %p130 = scmp.ne.s32.totalorder %s119, %s120
      %p131 = scmp.eq.s32.totalorder %s25, 0
      %p132 = por %p130, %p131
      %p133 = scmp.ne.s32.totalorder %s119, %s120
      %p134 = scmp.eq.s32.totalorder %s26, 1
      %p135 = por %p133, %p134
      %p137 = scmp.ne.s32.totalorder %s120, %s136
      %p138 = scmp.eq.s32.totalorder %s26, 0
      %p139 = por %p137, %p138
      %s141 = sadd.s32 %s140, 1
      %p144 = scmp.eq.s32.totalorder %s20, 1
      %p145 = scmp.ne.s32.totalorder %s140, %s142
      %p146 = scmp.eq.s32.totalorder %s20, 0
      %p147 = por %p145, %p146
      %p148 = scmp.ne.s32.totalorder %s140, %s142
      %p149 = scmp.eq.s32.totalorder %s25, 1
      %p150 = por %p148, %p149
      %p151 = scmp.ne.s32.totalorder %s142, %s143
      %p152 = scmp.eq.s32.totalorder %s25, 0
      %p153 = por %p151, %p152
      %p154 = scmp.ne.s32.totalorder %s142, %s143
      %p155 = scmp.eq.s32.totalorder %s26, 1
      %p156 = por %p154, %p155
      %p158 = scmp.ne.s32.totalorder %s143, %s157
      %p159 = scmp.eq.s32.totalorder %s26, 0
      %p160 = por %p158, %p159
      %s162 = sadd.s32 %s161, 1
      %p165 = scmp.eq.s32.totalorder %s20, 1
      %p166 = scmp.ne.s32.totalorder %s161, %s163
      %p167 = scmp.eq.s32.totalorder %s20, 0
      %p168 = por %p166, %p167
      %p169 = scmp.ne.s32.totalorder %s161, %s163
      %p170 = scmp.eq.s32.totalorder %s25, 1
      %p171 = por %p169, %p170
      %p172 = scmp.ne.s32.totalorder %s163, %s164
      %p173 = scmp.eq.s32.totalorder %s25, 0
      %p174 = por %p172, %p173
      %p175 = scmp.ne.s32.totalorder %s163, %s164
      %p176 = scmp.eq.s32.totalorder %s26, 1
      %p177 = por %p175, %p176
      %p179 = scmp.ne.s32.totalorder %s164, %s178
      %p180 = scmp.eq.s32.totalorder %s26, 0
      %p181 = por %p179, %p180
      %s183 = sadd.s32 %s182, 1
      %p186 = scmp.eq.s32.totalorder %s20, 1
      %p187 = scmp.ne.s32.totalorder %s182, %s184
      %p188 = scmp.eq.s32.totalorder %s20, 0
      %p189 = por %p187, %p188
      %p190 = scmp.ne.s32.totalorder %s182, %s184
      %p191 = scmp.eq.s32.totalorder %s25, 1
      %p192 = por %p190, %p191
      %p193 = scmp.ne.s32.totalorder %s184, %s185
      %p194 = scmp.eq.s32.totalorder %s25, 0
      %p195 = por %p193, %p194
      %p196 = scmp.ne.s32.totalorder %s184, %s185
      %p197 = scmp.eq.s32.totalorder %s26, 1
      %p198 = por %p196, %p197
      %p200 = scmp.ne.s32.totalorder %s185, %s199
      %p201 = scmp.eq.s32.totalorder %s26, 0
      %p202 = por %p200, %p201
      %s204 = sadd.s32 %s203, 1
      %p207 = scmp.eq.s32.totalorder %s20, 1
      %p208 = scmp.ne.s32.totalorder %s203, %s205
      %p209 = scmp.eq.s32.totalorder %s20, 0
      %p210 = por %p208, %p209
      %p211 = scmp.ne.s32.totalorder %s203, %s205
      %p212 = scmp.eq.s32.totalorder %s25, 1
      %p213 = por %p211, %p212
      %p214 = scmp.ne.s32.totalorder %s205, %s206
      %p215 = scmp.eq.s32.totalorder %s25, 0
      %p216 = por %p214, %p215
      %p217 = scmp.ne.s32.totalorder %s205, %s206
      %p218 = scmp.eq.s32.totalorder %s26, 1
      %p219 = por %p217, %p218
      %p221 = scmp.ne.s32.totalorder %s206, %s220
      %p222 = scmp.eq.s32.totalorder %s26, 0
      %p223 = por %p221, %p222
      %s225 = sadd.s32 %s224, 1
      %p228 = scmp.eq.s32.totalorder %s20, 1
      %p229 = scmp.ne.s32.totalorder %s224, %s226
      %p230 = scmp.eq.s32.totalorder %s20, 0
      %p231 = por %p229, %p230
      %p232 = scmp.ne.s32.totalorder %s224, %s226
      %p233 = scmp.eq.s32.totalorder %s25, 1
      %p234 = por %p232, %p233
      %p235 = scmp.ne.s32.totalorder %s226, %s227
      %p236 = scmp.eq.s32.totalorder %s25, 0
      %p237 = por %p235, %p236
      %p238 = scmp.ne.s32.totalorder %s226, %s227
      %p239 = scmp.eq.s32.totalorder %s26, 1
      %p240 = por %p238, %p239
      %p242 = scmp.ne.s32.totalorder %s227, %s241
      %p243 = scmp.eq.s32.totalorder %s26, 0
      %p244 = por %p242, %p243
      %s246 = sadd.s32 %s245, 1
      %p249 = scmp.eq.s32.totalorder %s20, 1
      %p250 = scmp.ne.s32.totalorder %s245, %s247
      %p251 = scmp.eq.s32.totalorder %s20, 0
      %p252 = por %p250, %p251
      %p253 = scmp.ne.s32.totalorder %s245, %s247
      %p254 = scmp.eq.s32.totalorder %s25, 1
      %p255 = por %p253, %p254
      %p256 = scmp.ne.s32.totalorder %s247, %s248
      %p257 = scmp.eq.s32.totalorder %s25, 0
      %p258 = por %p256, %p257
      %p259 = scmp.ne.s32.totalorder %s247, %s248
      %p260 = scmp.eq.s32.totalorder %s26, 1
      %p261 = por %p259, %p260
      %p263 = scmp.ne.s32.totalorder %s248, %s262
      %p264 = scmp.eq.s32.totalorder %s26, 0
      %p265 = por %p263, %p264
      %s267 = sadd.s32 %s266, 1
      %p270 = scmp.eq.s32.totalorder %s20, 1
      %p271 = scmp.ne.s32.totalorder %s266, %s268
      %p272 = scmp.eq.s32.totalorder %s20, 0
      %p273 = por %p271, %p272
      %p274 = scmp.ne.s32.totalorder %s266, %s268
      %p275 = scmp.eq.s32.totalorder %s25, 1
      %p276 = por %p274, %p275
      %p277 = scmp.ne.s32.totalorder %s268, %s269
      %p278 = scmp.eq.s32.totalorder %s25, 0
      %p279 = por %p277, %p278
      %p280 = scmp.ne.s32.totalorder %s268, %s269
      %p281 = scmp.eq.s32.totalorder %s26, 1
      %p282 = por %p280, %p281
      %p284 = scmp.ne.s32.totalorder %s269, %s283
      %p285 = scmp.eq.s32.totalorder %s26, 0
      %p286 = por %p284, %p285
      %s288 = sadd.s32 %s287, 1
      %p291 = scmp.eq.s32.totalorder %s20, 1
      %p292 = scmp.ne.s32.totalorder %s287, %s289
      %p293 = scmp.eq.s32.totalorder %s20, 0
      %p294 = por %p292, %p293
      %p295 = scmp.ne.s32.totalorder %s287, %s289
      %p296 = scmp.eq.s32.totalorder %s25, 1
      %p297 = por %p295, %p296
      %p298 = scmp.ne.s32.totalorder %s289, %s290
      %p299 = scmp.eq.s32.totalorder %s25, 0
      %p300 = por %p298, %p299
      %p301 = scmp.ne.s32.totalorder %s289, %s290
      %p302 = scmp.eq.s32.totalorder %s26, 1
      %p303 = por %p301, %p302
      %p305 = scmp.ne.s32.totalorder %s290, %s304
      %p306 = scmp.eq.s32.totalorder %s26, 0
      %p307 = por %p305, %p306
      %s308 = ssub.s32 %s27, %s39
      %s309 = ssub.s32 %s28, %s35
      %s310 = sor.u32 %s308, %s309
      %p311 = scmp.eq.s32.totalorder %s310, 0
      %s313 = sadd.s32 %s312, 1
      %s314 = scalar_select %p311, %s312, %s313
      %p317 = pneg %p311
      %p318 = scmp.eq.s32.totalorder %s20, 1
      %p319 = por %p317, %p318
      %p320 = scmp.ne.s32.totalorder %s312, %s315
      %p321 = scmp.eq.s32.totalorder %s20, 0
      %p322 = por %p320, %p321
      %p323 = scmp.ne.s32.totalorder %s312, %s315
      %p324 = scmp.eq.s32.totalorder %s25, 1
      %p325 = por %p323, %p324
      %p326 = scmp.ne.s32.totalorder %s315, %s316
      %p327 = scmp.eq.s32.totalorder %s25, 0
      %p328 = por %p326, %p327
      %p329 = scmp.ne.s32.totalorder %s315, %s316
      %p330 = scmp.eq.s32.totalorder %s26, 1
      %p331 = por %p329, %p330
      %p333 = scmp.ne.s32.totalorder %s316, %s332
      %p334 = scmp.eq.s32.totalorder %s26, 0
      %p335 = por %p333, %p334
      %p336 = scmp.le.s32.totalorder 1, %s20
      %p337 = scmp.lt.s32.totalorder %s20, 3
      %p338 = pnand %p336, %p337
      %p339 = pneg %p338
      // Predicated region
      $region9: #{tpu_custom_call.1} parent=5 // pred_check
        _
      $region10: #{tpu_custom_call.1} parent=5 // pred_check_branch
        %341 = sbr.rel (%p338) target = $region12
      $region11: #{tpu_custom_call.1} parent=5 // pred_region
        %s342 = ssub.s32 %s20, 1
        // Predicated region
        $region13: #{tpu_custom_call.1} parent=11 // pred_check
          %p343 = pneg %p153
        $region14: #{tpu_custom_call.1} parent=11 // pred_check_branch
          %345 = sbr.rel (%p343) target = $region16
        $region15: #{tpu_custom_call.1} parent=11 // pred_region
          _
        $region16: #{tpu_custom_call.1} parent=11 // pred_fallthru
          _
        // Predicated region
        $region17: #{tpu_custom_call.1} parent=11 // pred_check
          %p346 = pneg %p174
        $region18: #{tpu_custom_call.1} parent=11 // pred_check_branch
          %348 = sbr.rel (%p346) target = $region20
        $region19: #{tpu_custom_call.1} parent=11 // pred_region
          _
        $region20: #{tpu_custom_call.1} parent=11 // pred_fallthru
          _
        // Predicated region
        $region21: #{tpu_custom_call.1} parent=11 // pred_check
          %p349 = pneg %p195
        $region22: #{tpu_custom_call.1} parent=11 // pred_check_branch
          %351 = sbr.rel (%p349) target = $region24
        $region23: #{tpu_custom_call.1} parent=11 // pred_region
          _
        $region24: #{tpu_custom_call.1} parent=11 // pred_fallthru
          _
        // Predicated region
        $region25: #{tpu_custom_call.1} parent=11 // pred_check
          %p352 = pneg %p216
        $region26: #{tpu_custom_call.1} parent=11 // pred_check_branch
          %354 = sbr.rel (%p352) target = $region28
        $region27: #{tpu_custom_call.1} parent=11 // pred_region
          _
        $region28: #{tpu_custom_call.1} parent=11 // pred_fallthru
          _
        // Predicated region
        $region29: #{tpu_custom_call.1} parent=11 // pred_check
          %p355 = pneg %p237
        $region30: #{tpu_custom_call.1} parent=11 // pred_check_branch
          %357 = sbr.rel (%p355) target = $region32
        $region31: #{tpu_custom_call.1} parent=11 // pred_region
          _
        $region32: #{tpu_custom_call.1} parent=11 // pred_fallthru
          _
        // Predicated region
        $region33: #{tpu_custom_call.1} parent=11 // pred_check
          %p358 = pneg %p258
        $region34: #{tpu_custom_call.1} parent=11 // pred_check_branch
          %360 = sbr.rel (%p358) target = $region36
        $region35: #{tpu_custom_call.1} parent=11 // pred_region
          _
        $region36: #{tpu_custom_call.1} parent=11 // pred_fallthru
          _
        // Predicated region
        $region37: #{tpu_custom_call.1} parent=11 // pred_check
          %p361 = pneg %p279
        $region38: #{tpu_custom_call.1} parent=11 // pred_check_branch
          %363 = sbr.rel (%p361) target = $region40
        $region39: #{tpu_custom_call.1} parent=11 // pred_region
          _
        $region40: #{tpu_custom_call.1} parent=11 // pred_fallthru
          _
        // Predicated region
        $region41: #{tpu_custom_call.1} parent=11 // pred_check
          %p364 = pneg %p300
        $region42: #{tpu_custom_call.1} parent=11 // pred_check_branch
          %366 = sbr.rel (%p364) target = $region44
        $region43: #{tpu_custom_call.1} parent=11 // pred_region
          _
        $region44: #{tpu_custom_call.1} parent=11 // pred_fallthru
          _
      $region12: #{tpu_custom_call.1} parent=5 // pred_fallthru
        _
      %p367 = scmp.lt.s32.totalorder %s20, 2
      // Predicated region
      $region45: #{tpu_custom_call.1} parent=5 // pred_check
        %p368 = pneg %p367
      $region46: #{tpu_custom_call.1} parent=5 // pred_check_branch
        %370 = sbr.rel (%p368) target = $region48
      $region47: #{tpu_custom_call.1} parent=5 // pred_region
        // Predicated region
        $region49: #{tpu_custom_call.1} parent=47 // pred_check
          %p371 = pneg %p62
        $region50: #{tpu_custom_call.1} parent=47 // pred_check_branch
          %373 = sbr.rel (%p371) target = $region52
        $region51: #{tpu_custom_call.1} parent=47 // pred_region
          %s374 = smul.u32 %s28, 2
          %s375 = ssub.s32 %s374, 1
          %p376 = scmp.gt.s32.totalorder %s375, 0
          %s377 = scalar_select %p376, %s375, 0
          %p378 = scmp.lt.s32.totalorder %s27, 1
          %s379 = scalar_select %p378, %s27, 1
          %p380 = scmp.lt.s32.totalorder %s377, 1
          %s381 = scalar_select %p380, %s377, 1
          %s382 = smul.addr %s379, 2
          %s383 = sadd.s32 %s381, %s382
          %s384 = smul.addr %s383, 8
          %s385 = scalar_lea.vmem %s0, %s384
          %s386 = smul.u32 %s28, 2
          %s387 = ssub.s32 %s386, 1
          %p388 = scmp.gt.s32.totalorder %s387, 0
          %s389 = scalar_select %p388, %s387, 0
        $region52: #{tpu_custom_call.1} parent=47 // pred_fallthru
          _
        // Predicated region
        $region53: #{tpu_custom_call.1} parent=47 // pred_check
          %p390 = pneg %p90
        $region54: #{tpu_custom_call.1} parent=47 // pred_check_branch
          %392 = sbr.rel (%p390) target = $region56
        $region55: #{tpu_custom_call.1} parent=47 // pred_region
          %s393 = smul.u32 2, %s28
          %p394 = scmp.lt.s32.totalorder %s27, 1
          %s395 = scalar_select %p394, %s27, 1
          %p396 = scmp.lt.s32.totalorder %s393, 1
          %s397 = scalar_select %p396, %s393, 1
          %s398 = smul.addr %s395, 2
          %s399 = sadd.s32 %s397, %s398
          %s400 = smul.addr %s399, 8
          %s401 = scalar_lea.vmem %s1, %s400
          %s402 = smul.u32 2, %s28
        $region56: #{tpu_custom_call.1} parent=47 // pred_fallthru
          _
        // Predicated region
        $region57: #{tpu_custom_call.1} parent=47 // pred_check
          %p403 = pneg %p126
        $region58: #{tpu_custom_call.1} parent=47 // pred_check_branch
          %405 = sbr.rel (%p403) target = $region60
        $region59: #{tpu_custom_call.1} parent=47 // pred_region
          %s406 = sadd.s32 %s28, 1
          %s407 = smul.u32 %s406, 2
          %p408 = scmp.lt.s32.totalorder %s407, 1
          %s409 = scalar_select %p408, %s407, 1
          %p410 = scmp.lt.s32.totalorder %s27, 1
          %s411 = scalar_select %p410, %s27, 1
          %p412 = scmp.lt.s32.totalorder %s409, 1
          %s413 = scalar_select %p412, %s409, 1
          %s414 = smul.addr %s411, 2
          %s415 = sadd.s32 %s413, %s414
          %s416 = smul.addr %s415, 8
          %s417 = scalar_lea.vmem %s2, %s416
          %s418 = sadd.s32 %s28, 1
          %s419 = smul.u32 %s418, 2
          %p420 = scmp.lt.s32.totalorder %s419, 1
          %s421 = scalar_select %p420, %s419, 1
        $region60: #{tpu_custom_call.1} parent=47 // pred_fallthru
          _
      $region48: #{tpu_custom_call.1} parent=5 // pred_fallthru
        _
      %p422 = scmp.le.s32.totalorder 1, %s20
      %p423 = scmp.lt.s32.totalorder %s20, 3
      %p424 = pnand %p422, %p423
      %p425 = pneg %p424
      // Predicated region
      $region61: #{tpu_custom_call.1} parent=5 // pred_check
        _
      $region62: #{tpu_custom_call.1} parent=5 // pred_check_branch
        %427 = sbr.rel (%p424) target = $region64
      $region63: #{tpu_custom_call.1} parent=5 // pred_region
        %s428 = ssub.s32 %s20, 1
        %s429 = smul.u32 %s30, 2
        %s430 = ssub.s32 %s429, 1
        %p431 = scmp.gt.s32.totalorder %s430, 0
        %s432 = scalar_select %p431, %s430, 0
        %p433 = scmp.lt.s32.totalorder %s29, 1
        %s434 = scalar_select %p433, %s29, 1
        %p435 = scmp.lt.s32.totalorder %s432, 1
        %s436 = scalar_select %p435, %s432, 1
        %s437 = smul.addr %s434, 2
        %s438 = sadd.s32 %s436, %s437
        %s439 = smul.addr %s438, 8
        %s440 = scalar_lea.vmem %s0, %s439
        %p441 = pneg %p68
        %p442 = pneg %p65
        %s443 = smul.u32 2, %s30
        %p444 = scmp.lt.s32.totalorder %s29, 1
        %s445 = scalar_select %p444, %s29, 1
        %p446 = scmp.lt.s32.totalorder %s443, 1
        %s447 = scalar_select %p446, %s443, 1
        %s448 = smul.addr %s445, 2
        %s449 = sadd.s32 %s447, %s448
        %s450 = smul.addr %s449, 8
        %s451 = scalar_lea.vmem %s1, %s450
        %p452 = pneg %p96
        %p453 = pneg %p93
        %s454 = sadd.s32 %s30, 1
        %s455 = smul.u32 %s454, 2
        %p456 = scmp.lt.s32.totalorder %s455, 1
        %s457 = scalar_select %p456, %s455, 1
        %p458 = scmp.lt.s32.totalorder %s29, 1
        %s459 = scalar_select %p458, %s29, 1
        %p460 = scmp.lt.s32.totalorder %s457, 1
        %s461 = scalar_select %p460, %s457, 1
        %s462 = smul.addr %s459, 2
        %s463 = sadd.s32 %s461, %s462
        %s464 = smul.addr %s463, 8
        %s465 = scalar_lea.vmem %s2, %s464
        %p466 = pneg %p132
        %p467 = pneg %p129
        %p468 = pneg %p153
        %p469 = pneg %p150
        %p470 = pneg %p174
        %p471 = pneg %p171
        %p472 = pneg %p195
        %p473 = pneg %p192
        %p474 = pneg %p216
        %p475 = pneg %p213
        %p476 = pneg %p237
        %p477 = pneg %p234
        %p478 = pneg %p258
        %p479 = pneg %p255
        %p480 = pneg %p279
        %p481 = pneg %p276
        %p482 = pneg %p300
        %p483 = pneg %p297
        %p484 = pneg %p328
        %p485 = pneg %p325
        %s486 = sand.u32 %s315, 1
        %s487 = scalar_lea.sflag [#allocation3], %s486
        %s488 = sand.u32 %s315, 1
        %s489 = smul.addr %s488, 16
        %s490 = scalar_lea.vmem [#allocation2], %s489
        %s491 = smul.u32 %s30, 2
        %s492 = ssub.s32 %s491, 1
        %p493 = scmp.gt.s32.totalorder %s492, 0
        %s494 = scalar_select %p493, %s492, 0
        %p495 = scmp.lt.s32.totalorder %s29, 1
        %s496 = scalar_select %p495, %s29, 1
        %p497 = scmp.lt.s32.totalorder %s494, 1
        %s498 = scalar_select %p497, %s494, 1
        %s499 = smul.addr %s496, 2
        %s500 = sadd.s32 %s498, %s499
        %s501 = smul.addr %s500, 8
        %s502 = scalar_lea.vmem %s0, %s501
        %s503 = smul.u32 %s30, 2
        %s504 = ssub.s32 %s503, 1
        %p505 = scmp.gt.s32.totalorder %s504, 0
        %s506 = scalar_select %p505, %s504, 0
        %s507 = smul.u32 2, %s30
        %p508 = scmp.lt.s32.totalorder %s29, 1
        %s509 = scalar_select %p508, %s29, 1
        %p510 = scmp.lt.s32.totalorder %s507, 1
        %s511 = scalar_select %p510, %s507, 1
        %s512 = smul.addr %s509, 2
        %s513 = sadd.s32 %s511, %s512
        %s514 = smul.addr %s513, 8
        %s515 = scalar_lea.vmem %s1, %s514
        %s516 = smul.u32 2, %s30
        %s517 = sadd.s32 %s30, 1
        %s518 = smul.u32 %s517, 2
        %p519 = scmp.lt.s32.totalorder %s518, 1
        %s520 = scalar_select %p519, %s518, 1
        %p521 = scmp.lt.s32.totalorder %s29, 1
        %s522 = scalar_select %p521, %s29, 1
        %p523 = scmp.lt.s32.totalorder %s520, 1
        %s524 = scalar_select %p523, %s520, 1
        %s525 = smul.addr %s522, 2
        %s526 = sadd.s32 %s524, %s525
        %s527 = smul.addr %s526, 8
        %s528 = scalar_lea.vmem %s2, %s527
        %s529 = sadd.s32 %s30, 1
        %s530 = smul.u32 %s529, 2
        %p531 = scmp.lt.s32.totalorder %s530, 1
        %s532 = scalar_select %p531, %s530, 1
        %s533 = smul.u32 2, %s30
        %v534 = vld [vmem:[%s502] sm:$0xff]
        %v535 = vld [vmem:[%s515] sm:$0xff]
        %v536 = vld [vmem:[%s515 + $0x8] sm:$0xff]
        %v537 = vld [vmem:[%s528] sm:$0xff]
        %v538 = vld [vmem:[%s3] sm:$0xff]
        %v539 = vld [vmem:[%s4] sm:$0x1]
        %v541 = vperm.slane %v539, 0
        %vm543 = vcmask 64512
        %v545 = vsel %vm543, %v534, 0
        %v548 = vsel %vm543, %v535, 0
        %v551 = vsel %vm543, %v536, 0
        %v554 = vsel %vm543, %v537, 0
        %556 = vmatpush.msra.mxu0 0.0
        %557 = vmatpush.msra.mxu0 0.0
        %558 = vmatpush.msra.mxu0 0.0
        %559 = vmatpush.msra.mxu0 0.0
        %560 = vmatpush.msra.mxu0 0.0
        %561 = vmatpush.msra.mxu0 0.0
        %562 = vmatpush.msra.mxu0 0.0
        %563 = vmatpush.msra.mxu0 0.0
        %564 = vmatpush.msra.mxu0 0.0
        %565 = vmatpush.msra.mxu0 0.0
        %566 = vmatpush.msra.mxu0 0.0
        %567 = vmatpush.msra.mxu0 0.0
        %568 = vmatpush.msra.mxu0 0.0
        %569 = vmatpush.msra.mxu0 0.0
        %570 = vmatpush.msra.mxu0 0.0
        %571 = vmatpush.msra.mxu0 %v538
        %572 = vmatmul.f32.gmra.mxu0 %v545
        %v573 = vpop.f32.mrf.mxu0
        %v574 = vadd.f32 %v541, %v573
        %575 = vmatmul.f32.gmra.mxu0 %v548
        %v576 = vpop.f32.mrf.mxu0
        %v577 = vadd.f32 %v541, %v576
        %578 = vmatmul.f32.gmra.mxu0 %v551
        %v579 = vpop.f32.mrf.mxu0
        %v580 = vadd.f32 %v541, %v579
        %581 = vmatmul.f32.gmra.mxu0 %v554
        %v582 = vpop.f32.mrf.mxu0
        %v583 = vadd.f32 %v541, %v582
        %584 = vdwg.mxu0
        %v585 = vld [vmem:[%s5] sm:$0xff]
        %v586 = vld [vmem:[%s5 + $0x8] sm:$0xff]
        %v587 = vld [vmem:[%s6] sm:$0x1]
        %v589 = vperm.slane %v587, 0
        %vm591 = vcmask 130048
        %v593 = vsel %vm591, %v574, 0
        %v596 = vsel %vm591, %v577, 0
        %v599 = vsel %vm591, %v580, 0
        %v602 = vsel %vm591, %v583, 0
        %604 = vmatpush.msra.mxu0 0.0
        %605 = vmatpush.msra.mxu0 0.0
        %606 = vmatpush.msra.mxu0 0.0
        %607 = vmatpush.msra.mxu0 0.0
        %608 = vmatpush.msra.mxu0 0.0
        %609 = vmatpush.msra.mxu0 0.0
        %610 = vmatpush.msra.mxu0 0.0
        %611 = vmatpush.msra.mxu0 0.0
        %612 = vmatpush.msra.mxu0 0.0
        %613 = vmatpush.msra.mxu0 0.0
        %614 = vmatpush.msra.mxu0 0.0
        %615 = vmatpush.msra.mxu0 0.0
        %616 = vmatpush.msra.mxu0 0.0
        %617 = vmatpush.msra.mxu0 0.0
        %618 = vmatpush.msra.mxu0 %v586
        %619 = vmatpush.msra.mxu0 %v585
        %620 = vmatmul.f32.gmra.mxu0 %v593
        %v621 = vpop.f32.mrf.mxu0
        %v622 = vadd.f32 %v589, %v621
        %623 = vmatmul.f32.gmra.mxu0 %v596
        %v624 = vpop.f32.mrf.mxu0
        %v625 = vadd.f32 %v589, %v624
        %626 = vmatmul.f32.gmra.mxu0 %v599
        %v627 = vpop.f32.mrf.mxu0
        %v628 = vadd.f32 %v589, %v627
        %629 = vmatmul.f32.gmra.mxu0 %v602
        %v630 = vpop.f32.mrf.mxu0
        %v631 = vadd.f32 %v589, %v630
        %632 = vdwg.mxu0
        %vm633 = vcmp.gt.f32.partialorder %v622, 0.0
        %vm634 = vcmp.gt.f32.partialorder %v625, 0.0
        %vm635 = vcmp.gt.f32.partialorder %v628, 0.0
        %vm636 = vcmp.gt.f32.partialorder %v631, 0.0
        %v637 = vmul.f32 %v622, 0.25
        %v638 = vmul.f32 %v625, 0.25
        %v639 = vmul.f32 %v628, 0.25
        %v640 = vmul.f32 %v631, 0.25
        %v641 = vsel %vm633, %v622, %v637
        %v642 = vsel %vm634, %v625, %v638
        %v643 = vsel %vm635, %v628, %v639
        %v644 = vsel %vm636, %v631, %v640
        %s645 = smul.u32 %s30, 16
        %s646 = ssub.s32 %s645, 8
        %v647 = vlaneseq
        %v648 = vshrl.u32 %v647, 7
        %v649 = vadd.s32 %v648, 8
        %v650 = vadd.s32 %v648, 16
        %v651 = vadd.s32 %v648, 24
        %v652 = vstv %s646
        %v653 = vadd.s32 %v652, %v648
        %v654 = vadd.s32 %v652, %v649
        %v655 = vadd.s32 %v652, %v650
        %v656 = vadd.s32 %v652, %v651
        %vm657 = vcmp.ge.s32.totalorder %v653, 0
        %vm658 = vcmp.ge.s32.totalorder %v654, 0
        %vm659 = vcmp.ge.s32.totalorder %v655, 0
        %vm660 = vcmp.ge.s32.totalorder %v656, 0
        %vm661 = vcmp.lt.s32.totalorder %v653, 16
        %vm662 = vcmp.lt.s32.totalorder %v654, 16
        %vm663 = vcmp.lt.s32.totalorder %v655, 16
        %vm664 = vcmp.lt.s32.totalorder %v656, 16
        %vm665 = vmand %vm657, %vm661
        %vm666 = vmand %vm658, %vm662
        %vm667 = vmand %vm659, %vm663
        %vm668 = vmand %vm660, %vm664
        %v669 = vsel %vm665, 1, 0
        %v670 = vsel %vm666, 1, 0
        %v671 = vsel %vm667, 1, 0
        %v672 = vsel %vm668, 1, 0
        %vm673 = vcmp.eq.s32.totalorder %v669, 1
        %vm674 = vcmp.eq.s32.totalorder %v670, 1
        %vm675 = vcmp.eq.s32.totalorder %v671, 1
        %vm676 = vcmp.eq.s32.totalorder %v672, 1
        %v677 = vsel %vm673, %v641, 0.0
        %v678 = vsel %vm674, %v642, 0.0
        %v679 = vsel %vm675, %v643, 0.0
        %v680 = vsel %vm676, %v644, 0.0
        %v681 = vld [vmem:[%s8] sm:$0x1]
        %v683 = vperm.slane %v681, 0
        %v685 = vadd.f32 %v683, 0.0
        %v686 = vld [vmem:[%s7] sm:$0x1]
        %v687 = vperm.slane %v686, 0
        %v688 = vmul.f32 %v677, %v687
        %v689 = vmul.f32 %v678, %v687
        %v690 = vmul.f32 %v679, %v687
        %v691 = vadd.f32 %v685, %v688
        %v692 = vadd.f32 %v685, %v689
        %v693 = vadd.f32 %v685, %v690
        %v694 = vld [vmem:[%s7 + $0x1] sm:$0x1]
        %v695 = vperm.slane %v694, 0
        %v696 = vmul.f32 %v678, %v695
        %v697 = vmul.f32 %v679, %v695
        %vm700 = vcmask 1046528
        %v701 = vrot.slane %v696, 1
        %v702 = vrot.slane %v697, 1
        %v703 = vsel %vm700, %v701, %v702
        %v707 = vadd.f32 %v691, %v701
        %v708 = vadd.f32 %v692, %v703
        %v709 = vadd.f32 %v693, %v702
        %v710 = vld [vmem:[%s7 + $0x2] sm:$0x1]
        %v711 = vperm.slane %v710, 0
        %v712 = vmul.f32 %v678, %v711
        %v713 = vmul.f32 %v679, %v711
        %v714 = vmul.f32 %v680, %v711
        %vm718 = vcmask 1045504
        %v719 = vrot.slane %v712, 2
        %v720 = vrot.slane %v713, 2
        %v721 = vsel %vm718, %v719, %v720
        %v722 = vrot.slane %v714, 2
        %v723 = vsel %vm718, %v720, %v722
        %v727 = vadd.f32 %v707, %v719
        %v728 = vadd.f32 %v708, %v721
        %v729 = vadd.f32 %v709, %v723
        %vm730 = vcmp.gt.f32.partialorder %v727, 0.0
        %vm731 = vcmp.gt.f32.partialorder %v728, 0.0
        %vm732 = vcmp.gt.f32.partialorder %v729, 0.0
        %v733 = vmul.f32 %v727, 0.25
        %v734 = vmul.f32 %v728, 0.25
        %v735 = vmul.f32 %v729, 0.25
        %v736 = vsel %vm730, %v727, %v733
        %v737 = vsel %vm731, %v728, %v734
        %v738 = vsel %vm732, %v729, %v735
        %v739 = vld [vmem:[%s9] sm:$0xff]
        %v740 = vld [vmem:[%s9 + $0x8] sm:$0xff]
        %v741 = vld [vmem:[%s9 + $0x10] sm:$0xff]
        %v742 = vld [vmem:[%s9 + $0x18] sm:$0xff]
        %v743 = vld [vmem:[%s10] sm:$0x1]
        %v745 = vperm.slane %v743, 0
        %vm750 = vcmask 1040384
        %v751 = vrot.slane %v736, 7
        %v752 = vrot.slane %v737, 7
        %v753 = vsel %vm750, %v751, %v752
        %v754 = vrot.slane %v738, 7
        %v755 = vsel %vm750, %v752, %v754
        %vm756 = vcmask 261120
        %v757 = vsel %vm756, %v753, 0
        %v759 = vsel %vm756, %v755, 0
        %761 = vmatpush.msra.mxu0 0.0
        %762 = vmatpush.msra.mxu0 0.0
        %763 = vmatpush.msra.mxu0 0.0
        %764 = vmatpush.msra.mxu0 0.0
        %765 = vmatpush.msra.mxu0 0.0
        %766 = vmatpush.msra.mxu0 0.0
        %767 = vmatpush.msra.mxu0 0.0
        %768 = vmatpush.msra.mxu0 0.0
        %769 = vmatpush.msra.mxu0 0.0
        %770 = vmatpush.msra.mxu0 0.0
        %771 = vmatpush.msra.mxu0 0.0
        %772 = vmatpush.msra.mxu0 0.0
        %773 = vmatpush.msra.mxu0 %v742
        %774 = vmatpush.msra.mxu0 %v741
        %775 = vmatpush.msra.mxu0 %v740
        %776 = vmatpush.msra.mxu0 %v739
        %777 = vmatmul.f32.gmra.mxu0 %v757
        %v778 = vpop.f32.mrf.mxu0
        %v779 = vadd.f32 %v745, %v778
        %780 = vmatmul.f32.gmra.mxu0 %v759
        %v781 = vpop.f32.mrf.mxu0
        %v782 = vadd.f32 %v745, %v781
        %783 = vdwg.mxu0
        %v784 = vadd.f32 %v577, %v779
        %v785 = vadd.f32 %v580, %v782
        %788 = vrot.lane.b32.xlu0 %v779, 112
        %v789 = vpop.permute.xlu0 %788
        %790 = vrot.lane.b32.xlu0 %v782, 112
        %v791 = vpop.permute.xlu0 %790
        %v794 = vadd.f32 %v784, %v789
        %v795 = vadd.f32 %v785, %v791
        %796 = vst.msk [vmem:[%s490] sm:$0xff] %vm591, %v794
        %797 = vst.msk [vmem:[%s490 + $0x8] sm:$0xff] %vm591, %v795
        %s798 = sand.u32 %s315, 1
        %s799 = scalar_lea.sflag [#allocation3], %s798
        %s800 = sand.u32 %s315, 1
        %s801 = smul.addr %s800, 16
        %s802 = scalar_lea.vmem [#allocation2], %s801
        // Predicated region
        $region65: #{tpu_custom_call.1} parent=63 // pred_check
          %p803 = pneg %p325
        $region66: #{tpu_custom_call.1} parent=63 // pred_check_branch
          %805 = sbr.rel (%p803) target = $region68
        $region67: #{tpu_custom_call.1} parent=63 // pred_region
          %s806 = smul.u32 2, %s30
          %808 = vsyncadd %s799, 0
          %s809 = smul.addr %s29, 2
          %s810 = sadd.s32 %s806, %s809
          %s811 = smul.addr %s810, 8
          %s812 = scalar_lea.hbm %s11, %s811
          %s813 = sshll.u32 %s802, 4
          %s814 = int_to_ptr.vmem [resolvable:$true] %s813
          %s815 = sshll.u32 %s812, 4
          %s816 = int_to_ptr.hbm [resolvable:$true] %s815
          %821 = dma.vmem_to_hbm [thread:$0]  %s814, 256, %s816, %s799, 128, 128, 8
        $region68: #{tpu_custom_call.1} parent=63 // pred_fallthru
          _
      $region64: #{tpu_custom_call.1} parent=5 // pred_fallthru
        _
      %p822 = scmp.le.s32.totalorder 2, %s20
      // Predicated region
      $region69: #{tpu_custom_call.1} parent=5 // pred_check
        %p823 = pneg %p822
      $region70: #{tpu_custom_call.1} parent=5 // pred_check_branch
        %825 = sbr.rel (%p823) target = $region72
      $region71: #{tpu_custom_call.1} parent=5 // pred_region
        %s826 = ssub.s32 %s20, 2
        // Predicated region
        $region73: #{tpu_custom_call.1} parent=71 // pred_check
          %p827 = pneg %p331
        $region74: #{tpu_custom_call.1} parent=71 // pred_check_branch
          %829 = sbr.rel (%p827) target = $region76
        $region75: #{tpu_custom_call.1} parent=71 // pred_region
          %s830 = sand.u32 %s316, 1
          %s831 = scalar_lea.sflag [#allocation3], %s830
          %s832 = sand.u32 %s316, 1
          %s833 = smul.addr %s832, 16
          %s834 = scalar_lea.vmem [#allocation2], %s833
          %836 = dma.done %s831, 256
        $region76: #{tpu_custom_call.1} parent=71 // pred_fallthru
          _
      $region72: #{tpu_custom_call.1} parent=5 // pred_fallthru
        _
    $region6: #{tpu_custom_call.1} parent=1 // loop_footer
      %s24 = sadd.s32 1, %s20
    $region7: #{tpu_custom_call.1} parent=1 // loop_footer_branch
      %19 = sbr.rel target = $region3
    $region8: #{tpu_custom_call.1} parent=1 // loop_exit
      _
    %837 = vsyncpa [#allocation3], 1
    %s838 = scalar_lea.sflag [#allocation3], 1
    %839 = vsyncpa %s838, 1

</llo_original>
